<compile_context>
chip_gen: v6e
topology: v6e:2x2x1
jax: 0.10.0
libtpu: 0.0.40
codegen_flags: <defaults>
</compile_context>

<pallas_src>
import math
from functools import partial

import jax
import jax.numpy as jnp
from jax.experimental import pallas as pl
from jax.experimental.pallas import tpu as pltpu

# ---------------------------------------------------------------------------
# constants mirroring the PyTorch module
# ---------------------------------------------------------------------------
# TODO(synk): exact EventElementType enum values unavailable; assumed ordering.
PAD, BOS, EOS, TIMESIG, REST, CHORD = 0, 1, 2, 3, 4, 5
N_TYPES, N_STAFF = 6, 3

# TODO(synk): RectifierParser2 channel split unavailable; assumed layout:
#   tick(1) | division(8) | dots(3) | beam(4) | stemDirection(3)
#   | grace(1) | timeWarped(1) | fullMeasure(1) | fake(1)   => VEC_CHANNELS = 23
N_DIV, N_DOTS, N_BEAM, N_STEM = 8, 3, 4, 3
VEC_CHANNELS = 1 + N_DIV + N_DOTS + N_BEAM + N_STEM + 4
OUT_DIM = 1 + VEC_CHANNELS
OUT_PAD = ((OUT_DIM + 127) // 128) * 128     # lane-dense padded head width

LOSS_WEIGHTS = [10.0, 1e-6] + [1.0] * 20
EPS = 1e-7
LN_EPS = 1e-6


def _round128(n):
    return ((n + 127) // 128) * 128


# ---------------------------------------------------------------------------
# generation-aware VMEM budget / tile targets
# ---------------------------------------------------------------------------
def _device_kind():
    try:
        return jax.devices()[0].device_kind.lower()
    except Exception:
        return ""


_KIND = _device_kind()
if ("v5" in _KIND) or ("v6" in _KIND):
    VMEM_LIMIT_BYTES = 96 * 1024 * 1024     # 128 MiB physical on v5e/v6e
    BLOCK_M_TARGET = 512
elif "v7" in _KIND:
    VMEM_LIMIT_BYTES = 48 * 1024 * 1024     # 64 MiB physical on v7x
    BLOCK_M_TARGET = 256
else:
    VMEM_LIMIT_BYTES = None                 # unknown chip: compiler default
    BLOCK_M_TARGET = 256


def _mparams(n_parallel_axes=0):
    sems = ("parallel",) * n_parallel_axes if n_parallel_axes else None
    return pltpu.CompilerParams(
        dimension_semantics=sems, vmem_limit_bytes=VMEM_LIMIT_BYTES)


def _pick_block_m(M, target=None):
    """M-tile size. Prefers a divisor of M; otherwise the grid is pl.cdiv-based
    and the last tile is a padded/masked tail (row-independent kernels only)."""
    target = target or BLOCK_M_TARGET
    if M <= target:
        return M
    for tm in (1024, 512, 256, 128, 64, 32, 16, 8):
        if tm <= target and M % tm == 0:
            return tm
    return target


def _pick_bt(B, S):
    """How many batches per attention grid step (amortize ~0.35us/step)."""
    cap = max(1, 4096 // max(S, 8))
    bt = 1
    for c in range(1, min(B, cap) + 1):
        if B % c == 0:
            bt = c
    return bt


# ---------------------------------------------------------------------------
# Pallas kernels
# ---------------------------------------------------------------------------
def _linear_kernel(x_ref, w_ref, b_ref, o_ref):
    # bf16 activations & weights on the MXU, f32 accumulation.
    o_ref[...] = (jnp.dot(x_ref[...], w_ref[...],
                          preferred_element_type=jnp.float32)
                  + b_ref[...]).astype(o_ref.dtype)


def _linear_res_kernel(x_ref, w_ref, b_ref, r_ref, o_ref):
    o_ref[...] = (jnp.dot(x_ref[...], w_ref[...],
                          preferred_element_type=jnp.float32)
                  + b_ref[...]
                  + r_ref[...].astype(jnp.float32)).astype(o_ref.dtype)


def pallas_linear(x2d, w_bf16, b, residual=None, out_dtype=jnp.bfloat16,
                  block_m=None):
    """y = x @ w + b (+ residual).  x2d (M,K)->bf16, w (K,N) bf16, b (N,) f32."""
    M, K = x2d.shape
    N = w_bf16.shape[1]
    tm = _pick_block_m(M, block_m)
    grid = (pl.cdiv(M, tm),)
    in_specs = [
        pl.BlockSpec((tm, K), lambda i: (i, 0)),
        pl.BlockSpec((K, N), lambda i: (0, 0)),
        pl.BlockSpec((1, N), lambda i: (0, 0)),
    ]
    args = [x2d.astype(jnp.bfloat16), w_bf16, b.reshape(1, N)]
    if residual is None:
        kern = _linear_kernel
    else:
        in_specs.append(pl.BlockSpec((tm, N), lambda i: (i, 0)))
        args.append(residual.astype(jnp.bfloat16))
        kern = _linear_res_kernel
    # TODO(synk): add a K "arbitrary" axis + VMEM accumulator when the K*N
    # weight tile no longer fits VMEM (not needed at these model sizes).
    return pl.pallas_call(
        kern,
        out_shape=jax.ShapeDtypeStruct((M, N), out_dtype),
        grid=grid,
        in_specs=in_specs,
        out_specs=pl.BlockSpec((tm, N), lambda i: (i, 0)),
        compiler_params=_mparams(1),
    )(*args)


def _proj_res_ln_kernel(x_ref, w_ref, b_ref, r_ref, g_ref, bb_ref, o_ref):
    """out = LayerNorm(x @ w + b + residual) — matmul with fused epilogue."""
    y = (jnp.dot(x_ref[...], w_ref[...], preferred_element_type=jnp.float32)
         + b_ref[...] + r_ref[...].astype(jnp.float32))
    mu = jnp.mean(y, axis=-1, keepdims=True)
    var = jnp.mean((y - mu) ** 2, axis=-1, keepdims=True)
    o_ref[...] = ((y - mu) * jax.lax.rsqrt(var + LN_EPS) * g_ref[...]
                  + bb_ref[...]).astype(o_ref.dtype)


def pallas_proj_res_ln(x2d, w_bf16, b, res2d, g, beta, block_m=None):
    M, K = x2d.shape
    N = w_bf16.shape[1]
    tm = _pick_block_m(M, block_m)
    return pl.pallas_call(
        _proj_res_ln_kernel,
        out_shape=jax.ShapeDtypeStruct((M, N), jnp.bfloat16),
        grid=(pl.cdiv(M, tm),),
        in_specs=[
            pl.BlockSpec((tm, K), lambda i: (i, 0)),
            pl.BlockSpec((K, N), lambda i: (0, 0)),
            pl.BlockSpec((1, N), lambda i: (0, 0)),
            pl.BlockSpec((tm, N), lambda i: (i, 0)),
            pl.BlockSpec((1, N), lambda i: (0, 0)),
            pl.BlockSpec((1, N), lambda i: (0, 0)),
        ],
        out_specs=pl.BlockSpec((tm, N), lambda i: (i, 0)),
        compiler_params=_mparams(1),
    )(x2d.astype(jnp.bfloat16), w_bf16, b.reshape(1, N),
      res2d.astype(jnp.bfloat16), g.reshape(1, N), beta.reshape(1, N))


def _ffn_kernel(x_ref, w1_ref, b1_ref, w2_ref, b2_ref, g_ref, bb_ref, o_ref):
    """out = LayerNorm(relu(x @ w1 + b1) @ w2 + b2 + x) — whole FFN fused."""
    x = x_ref[...]                                               # bf16 (tm, D)
    # cast the (tm, DI) intermediate to bf16 right away (largest transient).
    h = jnp.maximum(
        jnp.dot(x, w1_ref[...], preferred_element_type=jnp.float32)
        + b1_ref[...], 0.0).astype(jnp.bfloat16)
    y = (jnp.dot(h, w2_ref[...], preferred_element_type=jnp.float32)
         + b2_ref[...] + x.astype(jnp.float32))
    mu = jnp.mean(y, axis=-1, keepdims=True)
    var = jnp.mean((y - mu) ** 2, axis=-1, keepdims=True)
    o_ref[...] = ((y - mu) * jax.lax.rsqrt(var + LN_EPS) * g_ref[...]
                  + bb_ref[...]).astype(o_ref.dtype)


def pallas_ffn(x2d, w1_bf16, b1, w2_bf16, b2, g, beta, block_m=None):
    M, D = x2d.shape
    DI = w1_bf16.shape[1]
    tm = _pick_block_m(M, block_m)
    return pl.pallas_call(
        _ffn_kernel,
        out_shape=jax.ShapeDtypeStruct((M, D), jnp.bfloat16),
        grid=(pl.cdiv(M, tm),),
        in_specs=[
            pl.BlockSpec((tm, D), lambda i: (i, 0)),
            pl.BlockSpec((D, DI), lambda i: (0, 0)),
            pl.BlockSpec((1, DI), lambda i: (0, 0)),
            pl.BlockSpec((DI, D), lambda i: (0, 0)),
            pl.BlockSpec((1, D), lambda i: (0, 0)),
            pl.BlockSpec((1, D), lambda i: (0, 0)),
            pl.BlockSpec((1, D), lambda i: (0, 0)),
        ],
        out_specs=pl.BlockSpec((tm, D), lambda i: (i, 0)),
        compiler_params=_mparams(1),
    )(x2d.astype(jnp.bfloat16), w1_bf16, b1.reshape(1, DI), w2_bf16,
      b2.reshape(1, D), g.reshape(1, D), beta.reshape(1, D))


def _attn_kernel(qkv_ref, m_ref, o_ref, *, n_head, d_k, d_v, scale):
    """Bt batches per step, all heads. qkv is the fused [q|k|v|pad] slab;
    static lane-offset slices in-kernel (no XLA-side q/k/v copies)."""
    hdk = n_head * d_k
    hdv = n_head * d_v
    qkv = qkv_ref[...]                                         # (bt, S, W) bf16
    # key-side mask bias, computed ONCE (hoisted out of the head loop)
    bias = jnp.where(m_ref[...] > 0.0, jnp.float32(0.0), jnp.float32(-1e9))
    # zero the lane-padding tail so nothing undefined reaches the projection
    if o_ref.shape[-1] > hdv:
        o_ref[:, :, hdv:] = jnp.zeros(
            (o_ref.shape[0], o_ref.shape[1], o_ref.shape[-1] - hdv),
            o_ref.dtype)
    for h in range(n_head):
        qh = qkv[:, :, h * d_k:(h + 1) * d_k]
        kh = qkv[:, :, hdk + h * d_k: hdk + (h + 1) * d_k]
        vh = qkv[:, :, 2 * hdk + h * d_v: 2 * hdk + (h + 1) * d_v]
        # batched over bt, contracting the last axes of q and k (no explicit .T)
        s = jnp.einsum('bqd,bkd->bqk', qh, kh,
                       preferred_element_type=jnp.float32) * scale + bias
        s = s - jnp.max(s, axis=-1, keepdims=True)
        p = jnp.exp(s)
        p = p * pl.reciprocal(jnp.sum(p, axis=-1, keepdims=True), approx=True)
        # direct lane-slice store per head (no concatenate / head list)
        o_ref[:, :, h * d_v:(h + 1) * d_v] = jnp.einsum(
            'bqk,bkd->bqd', p.astype(jnp.bfloat16), vh,
            preferred_element_type=jnp.float32).astype(o_ref.dtype)


def pallas_mha(qkv, maskf, scale, n_head, d_k, d_v, hv_pad):
    """qkv: (B,S,QKV_PAD) bf16 fused [q|k|v|pad], maskf: (B,1,S) f32
       -> (B,S,hv_pad) bf16 (padding lanes zeroed)."""
    B, S, W = qkv.shape
    bt = _pick_bt(B, S)
    # TODO(synk): for very long S switch to flash-style KV tiling; at these
    # sequence lengths the whole (S,S) score block fits VMEM comfortably.
    return pl.pallas_call(
        partial(_attn_kernel, n_head=n_head, d_k=d_k, d_v=d_v, scale=scale),
        out_shape=jax.ShapeDtypeStruct((B, S, hv_pad), jnp.bfloat16),
        grid=(B // bt,),
        in_specs=[
            pl.BlockSpec((bt, S, W), lambda b: (b, 0, 0)),
            pl.BlockSpec((bt, 1, S), lambda b: (b, 0, 0)),
        ],
        out_specs=pl.BlockSpec((bt, S, hv_pad), lambda b: (b, 0, 0)),
        compiler_params=_mparams(1),
    )(qkv, maskf)


def _masked_sums_kernel(v_ref, m_ref, s_ref, c_ref):
    m = m_ref[...]
    s_ref[...] = jnp.sum(v_ref[...] * m, axis=1, keepdims=True)
    c_ref[...] = jnp.sum(m, axis=1, keepdims=True)


def fused_masked_means(values, masks):
    """All masked-mean loss reductions in ONE pallas_call.

    values/masks: lists of (B,S)-shaped arrays -> (means[T], counts[T]).
    Full-array (ungridded) blocks; no zero-pad/scatter of the stacked slabs."""
    T = len(values)
    V = jnp.stack([v.reshape(-1).astype(jnp.float32) for v in values], 0)
    M = jnp.stack([m.reshape(-1).astype(jnp.float32) for m in masks], 0)
    # TODO(synk): add an N-axis "arbitrary" grid with output-resident sum/count
    # accumulators once B*S grows beyond a single VMEM block.
    s, c = pl.pallas_call(
        _masked_sums_kernel,
        out_shape=(jax.ShapeDtypeStruct((T, 1), jnp.float32),
                   jax.ShapeDtypeStruct((T, 1), jnp.float32)),
        compiler_params=_mparams(0),
    )(V, M)
    sums = s[:, 0]
    counts = c[:, 0]
    return sums / jnp.maximum(counts, 1.0), counts


def _rel_tick_kernel(tc_ref, tr_ref, d_ref, m_ref, s_ref, c_ref):
    """Per-batch pairwise tick-diff masked-MSE partials (parallel B axis)."""
    m = jnp.where(m_ref[...] != 0, jnp.float32(1.0), jnp.float32(0.0))  # (1,S,S)
    pred = tc_ref[...] - tr_ref[...]                                    # (1,S,S)
    sq = (pred - d_ref[...]) ** 2 * m
    s_ref[...] = jnp.sum(jnp.sum(sq, axis=2, keepdims=True), axis=1, keepdims=True)
    c_ref[...] = jnp.sum(jnp.sum(m, axis=2, keepdims=True), axis=1, keepdims=True)


def rel_tick_mse(tick_pred, tick_diff, maskT):
    B, S = tick_pred.shape
    t32 = tick_pred.astype(jnp.float32)
    s, c = pl.pallas_call(
        _rel_tick_kernel,
        out_shape=(jax.ShapeDtypeStruct((B, 1, 1), jnp.float32),
                   jax.ShapeDtypeStruct((B, 1, 1), jnp.float32)),
        grid=(B,),
        in_specs=[
            pl.BlockSpec((1, S, 1), lambda b: (b, 0, 0)),
            pl.BlockSpec((1, 1, S), lambda b: (b, 0, 0)),
            pl.BlockSpec((1, S, S), lambda b: (b, 0, 0)),
            pl.BlockSpec((1, S, S), lambda b: (b, 0, 0)),
        ],
        out_specs=(pl.BlockSpec((1, 1, 1), lambda b: (b, 0, 0)),
                   pl.BlockSpec((1, 1, 1), lambda b: (b, 0, 0))),
        compiler_params=_mparams(1),
    )(t32.reshape(B, S, 1), t32.reshape(B, 1, S),
      tick_diff.astype(jnp.float32), maskT.astype(jnp.int8))
    total_s = jnp.sum(s)
    total_c = jnp.sum(c)
    return total_s / jnp.maximum(total_c, 1.0), total_c


# ---------------------------------------------------------------------------
# model (glue in plain JAX, hot path in Pallas)
# ---------------------------------------------------------------------------
def sinusoid_encode(v, d_pos, angle_cycle):
    i = jnp.arange(d_pos, dtype=jnp.float32)
    denom = jnp.power(angle_cycle, (jnp.floor(i / 2.0) * 2.0) / d_pos)
    ang = v[..., None].astype(jnp.float32) / denom
    return jnp.where((jnp.arange(d_pos) % 2) == 0, jnp.sin(ang), jnp.cos(ang))


def xavier(key, shape, gain):
    fan_in, fan_out = shape[0], shape[1]
    bound = gain * math.sqrt(6.0 / (fan_in + fan_out))
    return jax.random.uniform(key, shape, jnp.float32, -bound, bound)


def init_params(key, cfg):
    gain = cfg["init_gain_n"] ** (-0.5)
    keys = iter(jax.random.split(key, 128))
    D, DI, H = cfg["d_model"], cfg["d_inner"], cfg["n_head"]
    DK, DV = cfg["d_k"], cfg["d_v"]
    HQKV = H * (2 * DK + DV)
    QKV_PAD = _round128(HQKV)
    HV = H * DV
    HV_PAD = _round128(HV)

    # fused event-encoder projection: [pos(3*d_pos) | feature | scalar(2)] -> D
    enc_w = jnp.concatenate([
        xavier(next(keys), (3 * cfg["d_position"], D), gain),
        xavier(next(keys), (cfg["d_feature"], D), gain),
        xavier(next(keys), (2, D), gain)], axis=0)

    out_w = jnp.zeros((D, OUT_PAD), jnp.float32).at[:, :OUT_DIM].set(
        xavier(next(keys), (D, OUT_DIM), gain))

    p = dict(
        type_emb=xavier(next(keys), (N_TYPES, D), gain),
        staff_emb=xavier(next(keys), (N_STAFF, D), gain),
        enc_w=enc_w.astype(jnp.bfloat16),
        enc_b=jnp.zeros((D,), jnp.float32),
        out_w=out_w.astype(jnp.bfloat16),              # lane-padded head
        out_b=jnp.zeros((OUT_PAD,), jnp.float32),
        layers=[],
    )
    for _ in range(cfg["n_layers"]):
        wq = xavier(next(keys), (D, H * DK), gain)
        wk = xavier(next(keys), (D, H * DK), gain)
        wv = xavier(next(keys), (D, H * DV), gain)
        w_qkv = jnp.zeros((D, QKV_PAD), jnp.float32).at[:, :HQKV].set(
            jnp.concatenate([wq, wk, wv], axis=1))      # lane-padded fused QKV
        wo = jnp.zeros((HV_PAD, D), jnp.float32).at[:HV, :].set(
            xavier(next(keys), (HV, D), gain))          # padded rows are zero
        p["layers"].append(dict(
            w_qkv=w_qkv.astype(jnp.bfloat16),
            b_qkv=jnp.zeros((QKV_PAD,), jnp.float32),
            wo=wo.astype(jnp.bfloat16),
            bo=jnp.zeros((D,), jnp.float32),
            ln1_g=jnp.ones((D,), jnp.float32), ln1_b=jnp.zeros((D,), jnp.float32),
            w1=xavier(next(keys), (D, DI), gain).astype(jnp.bfloat16),
            b1=jnp.zeros((DI,), jnp.float32),
            w2=xavier(next(keys), (DI, D), gain).astype(jnp.bfloat16),
            b2=jnp.zeros((D,), jnp.float32),
            ln2_g=jnp.ones((D,), jnp.float32), ln2_b=jnp.zeros((D,), jnp.float32),
        ))
    return p


def event_encode(p, batch, cfg):
    # TODO(synk): EventOrderedEncoder / EventEncoderV4 source unavailable;
    # deterministic surrogate with the same inputs / output shape (B*S, d_model).
    stype, staff = batch["type"], batch["staff"]
    B, S = stype.shape
    emb = p["type_emb"][stype] + p["staff_emb"][staff]              # (B,S,D)
    pos = jnp.concatenate(
        [sinusoid_encode(batch["x"], cfg["d_position"], cfg["angle_cycle"]),
         sinusoid_encode(batch["y1"], cfg["d_position"], cfg["angle_cycle"]),
         sinusoid_encode(batch["y2"], cfg["d_position"], cfg["angle_cycle"])],
        axis=-1,
    )
    scal = jnp.stack([batch["beading_pos"].astype(jnp.float32),
                      batch["time8th"].astype(jnp.float32)], axis=-1)
    inp = jnp.concatenate([pos, batch["feature"].astype(jnp.float32), scal],
                          axis=-1).reshape(B * S, -1)
    # single fused projection + embedding residual; bf16 residual stream out
    return pallas_linear(inp, p["enc_w"], p["enc_b"],
                         residual=emb.reshape(B * S, -1))


def encoder_layer(x2d, maskf, p, cfg, B, S):
    H, DK, DV = cfg["n_head"], cfg["d_k"], cfg["d_v"]
    hv_pad = p["wo"].shape[0]
    # fused (lane-padded) QKV projection: one wide matmul, bf16 out
    qkv = pallas_linear(x2d, p["w_qkv"], p["b_qkv"])        # (B*S, QKV_PAD) bf16
    # whole fused qkv goes to the attention kernel (no XLA-side q/k/v slicing)
    attn = pallas_mha(qkv.reshape(B, S, -1), maskf, 1.0 / math.sqrt(DK),
                      H, DK, DV, hv_pad)
    # output projection + residual + LayerNorm fused
    y2d = pallas_proj_res_ln(attn.reshape(B * S, hv_pad), p["wo"], p["bo"],
                             x2d, p["ln1_g"], p["ln1_b"])
    # FFN + residual + LayerNorm fused
    return pallas_ffn(y2d, p["w1"], p["b1"], p["w2"], p["b2"],
                      p["ln2_g"], p["ln2_b"])


def parse_rectifier_v2(vec):
    o = 0
    tick = vec[..., o]; o += 1
    division = vec[..., o:o + N_DIV]; o += N_DIV
    dots = vec[..., o:o + N_DOTS]; o += N_DOTS
    beam = vec[..., o:o + N_BEAM]; o += N_BEAM
    stem = vec[..., o:o + N_STEM]; o += N_STEM
    grace = jax.nn.sigmoid(vec[..., o]); o += 1
    warped = jax.nn.sigmoid(vec[..., o]); o += 1
    full = jax.nn.sigmoid(vec[..., o]); o += 1
    fake = jax.nn.sigmoid(vec[..., o]); o += 1
    return dict(tick=tick, division=division, dots=dots, beam=beam,
                stemDirection=stem, grace=grace, timeWarped=warped,
                fullMeasure=full, fake=fake)


def bead_picker_forward(params, batch, cfg):
    B, S = batch["type"].shape
    x2d = event_encode(params, batch, cfg)                     # (B*S, D) bf16
    # key-side padding mask (as in the PyTorch module: mask_pad.unsqueeze(-2));
    # fully-padded query rows attend uniformly but are masked in every loss.
    maskf = (batch["type"] != PAD).astype(jnp.float32).reshape(B, 1, S)
    for lp in params["layers"]:
        x2d = encoder_layer(x2d, maskf, lp, cfg, B, S)
    logits = pallas_linear(x2d, params["out_w"], params["out_b"],
                           out_dtype=jnp.float32)[:, :OUT_DIM].reshape(B, S, OUT_DIM)
    successor = jax.nn.sigmoid(logits[:, :, 0])
    rec = parse_rectifier_v2(logits[:, :, 1:])
    return successor, rec


# ---------------------------------------------------------------------------
# loss (BeadPickerLoss.forward, rectifier_version='v2', usePivotX=False)
# ---------------------------------------------------------------------------
def bce_elem(p, t):
    p = jnp.clip(p, EPS, 1.0 - EPS)
    return -(t * jnp.log(p) + (1.0 - t) * jnp.log1p(-p))


def _nll(logits, target):
    # TODO(synk): custom CrossEntropy class source unavailable; masked mean NLL assumed.
    logp = jax.nn.log_softmax(logits.astype(jnp.float32), axis=-1)
    return -jnp.take_along_axis(logp, target[..., None], axis=-1)[..., 0]


def _acc(logits, target):
    return (jnp.argmax(logits, -1) == target).astype(jnp.float32)


def _bacc(pred, target):
    return ((pred > 0.5).astype(jnp.float32) == target).astype(jnp.float32)


def bead_picker_loss_forward(params, batch, cfg):
    stype = batch["type"]
    pred_suc, rec = bead_picker_forward(params, batch, cfg)

    is_entity = stype != PAD
    is_rest = stype == REST
    is_chord = stype == CHORD
    is_event = is_rest | is_chord
    is_candidate = is_entity & (batch["beading_pos"] == 0)
    is_ce = is_candidate & is_event
    is_fixed = batch["beading_pos"] < 0
    eos = stype == EOS
    ones = jnp.ones_like(stype, dtype=bool)

    successor = batch["successor"]
    bce_suc = bce_elem(pred_suc, successor)
    acc_suc = ((pred_suc > cfg["decisive_confidence"]).astype(jnp.float32)
               == successor).astype(jnp.float32)
    sq_tick = (rec["tick"] - batch["tick"]) ** 2

    # all masked-mean reductions fused into ONE Pallas call
    terms = [
        (bce_suc, is_entity),                                           # 0
        (acc_suc, is_candidate),                                        # 1
        (sq_tick, ones),                                                # 2
        (sq_tick, is_fixed),                                            # 3
        (sq_tick, eos),                                                 # 4
        (_nll(rec["division"], batch["division"]), is_event),           # 5
        (_acc(rec["division"], batch["division"]), is_ce),              # 6
        (_nll(rec["dots"], batch["dots"]), is_event),                   # 7
        (_acc(rec["dots"], batch["dots"]), is_ce),                      # 8
        (_nll(rec["beam"], batch["beam"]), is_event),                   # 9
        (_acc(rec["beam"], batch["beam"]), is_chord),                   # 10
        (_nll(rec["stemDirection"], batch["stemDirection"]), is_event), # 11
        (_acc(rec["stemDirection"], batch["stemDirection"]), is_chord), # 12
        (bce_elem(rec["grace"], batch["grace"]), is_event),             # 13
        (_bacc(rec["grace"], batch["grace"]), is_chord),                # 14
        (bce_elem(rec["timeWarped"], batch["timeWarped"]), is_event),   # 15
        (_bacc(rec["timeWarped"], batch["timeWarped"]), is_event),      # 16
        (bce_elem(rec["fullMeasure"], batch["fullMeasure"]), is_event), # 17
        (_bacc(rec["fullMeasure"], batch["fullMeasure"]), is_rest),     # 18
        (bce_elem(rec["fake"], batch["fake"]), is_event),               # 19
        (_bacc(rec["fake"], batch["fake"]), is_event),                  # 20
    ]
    means, counts = fused_masked_means([v for v, _ in terms],
                                       [m for _, m in terms])

    loss_suc = means[0]
    err_suc = 1.0 - means[1]
    loss_tick_mse = means[2]
    err_tick = jnp.sqrt(loss_tick_mse)
    loss_tick_fixed = means[3]
    err_tick_fixed = jnp.sqrt(loss_tick_fixed)
    err_duration = jnp.sqrt(means[4])

    loss_rel_tick, n_rel_tick = rel_tick_mse(rec["tick"], batch["tickDiff"],
                                             batch["maskT"])
    err_rel_tick = jnp.sqrt(loss_rel_tick)
    loss_tick = loss_tick_mse + loss_rel_tick        # not use_vtick (rectifier v2)

    loss_division, err_division = means[5], 1.0 - means[6]
    loss_dots, err_dots = means[7], 1.0 - means[8]
    loss_beam, err_beam = means[9], 1.0 - means[10]
    loss_direction, err_direction = means[11], 1.0 - means[12]
    loss_grace, err_grace = means[13], 1.0 - means[14]
    loss_warped, err_warped = means[15], 1.0 - means[16]
    loss_full, err_full = means[17], 1.0 - means[18]
    loss_fake, err_fake = means[19], 1.0 - means[20]

    losses = [loss_suc, loss_tick_fixed, loss_tick, loss_division, loss_dots,
              loss_beam, loss_direction, loss_grace, loss_warped, loss_full,
              loss_fake]
    loss = sum(w * l for w, l in zip(LOSS_WEIGHTS, losses))

    n_candidates, n_events = counts[1], counts[5]
    n_ce, n_chords, n_rests, n_fixed = counts[6], counts[10], counts[18], counts[3]
    metrics = dict(
        err_suc=(err_suc, n_candidates),
        loss_suc=(loss_suc, 1),
        err_tick=(err_tick, n_events),
        err_tick_fixed=(err_tick_fixed, n_fixed),
        err_rel_tick=(err_rel_tick, n_rel_tick),
        err_duration=(err_duration, 1),
        err_division=(err_division, n_ce),
        err_dots=(err_dots, n_ce),
        err_beam=(err_beam, n_chords),
        err_stemDirection=(err_direction, n_chords),
        err_grace=(err_grace, n_chords),
        err_timeWarped=(err_warped, n_events),
        err_fullMeasure=(err_full, n_rests),
        err_fake=(err_fake, n_events),
    )
    return loss, metrics


# ---------------------------------------------------------------------------
# main
# ---------------------------------------------------------------------------
if __name__ == "__main__":
    B, S = 2, 8
    cfg = dict(
        n_layers=1, d_model=32, d_inner=64, n_head=4, d_k=8, d_v=8,
        d_position=16, angle_cycle=1000.0, d_feature=8,
        decisive_confidence=0.5, init_gain_n=2,
    )

    key = jax.random.PRNGKey(0)
    k_param, *ks = jax.random.split(key, 16)
    params = init_params(k_param, cfg)

    stype = jnp.array([[BOS, CHORD, REST, CHORD, EOS, CHORD, REST, PAD],
                       [BOS, CHORD, CHORD, REST, CHORD, REST, EOS, PAD]], jnp.int32)
    beading_pos = jnp.array([[0, 0, -1, 1, 0, 0, -1, 0],
                             [0, -1, 0, 0, 1, 0, 0, 0]], jnp.int32)

    tick = jax.random.uniform(ks[0], (B, S), jnp.float32, 0.0, 16.0)
    batch = dict(
        type=stype,
        staff=jax.random.randint(ks[1], (B, S), 0, N_STAFF),
        feature=jax.random.normal(ks[2], (B, S, cfg["d_feature"]), jnp.float32),
        x=jax.random.uniform(ks[3], (B, S), jnp.float32, 0.0, 100.0),
        y1=jax.random.uniform(ks[4], (B, S), jnp.float32, 0.0, 50.0),
        y2=jax.random.uniform(ks[5], (B, S), jnp.float32, 0.0, 50.0),
        beading_pos=beading_pos,
        time8th=jax.random.randint(ks[6], (B, S), 0, 8),
        successor=jax.random.bernoulli(ks[7], 0.5, (B, S)).astype(jnp.float32),
        tick=tick,
        division=jax.random.randint(ks[8], (B, S), 0, N_DIV),
        dots=jax.random.randint(ks[9], (B, S), 0, N_DOTS),
        beam=jax.random.randint(ks[10], (B, S), 0, N_BEAM),
        stemDirection=jax.random.randint(ks[11], (B, S), 0, N_STEM),
        grace=jax.random.bernoulli(ks[12], 0.3, (B, S)).astype(jnp.float32),
        timeWarped=jax.random.bernoulli(ks[13], 0.3, (B, S)).astype(jnp.float32),
        fullMeasure=jax.random.bernoulli(ks[14], 0.3, (B, S)).astype(jnp.float32),
        fake=jax.random.bernoulli(jax.random.fold_in(key, 99), 0.3, (B, S)).astype(jnp.float32),
        maskT=jax.random.bernoulli(jax.random.fold_in(key, 100), 0.5, (B, S, S)),
        tickDiff=tick[:, :, None] - tick[:, None, :]
        + 0.1 * jax.random.normal(jax.random.fold_in(key, 101), (B, S, S), jnp.float32),
    )

    loss, metrics = bead_picker_loss_forward(params, batch, cfg)
    jax.block_until_ready(loss)
    jax.block_until_ready(jax.tree_util.tree_leaves(metrics))
    print("KERNEL_OK")
</pallas_src>

<mosaic_0001>
module attributes {stable_mosaic.version = 11 : i64} {
  func.func @_linear_res_kernel(%arg0: i32, %arg1: memref<16x58xbf16, #tpu.memory_space<vmem>>, %arg2: memref<58x32xbf16, #tpu.memory_space<vmem>>, %arg3: memref<1x32xf32, #tpu.memory_space<vmem>>, %arg4: memref<16x32xbf16, #tpu.memory_space<vmem>>, %arg5: memref<16x32xbf16, #tpu.memory_space<vmem>>) attributes {dimension_semantics = [#tpu.dimension_semantics<parallel>], iteration_bounds = array<i64: 1>, scalar_prefetch = 0 : i64, scratch_operands = 0 : i64, tpu.core_type = #tpu.core_type<tc>, window_params = [{transform_indices = @transform_0, window_bounds = array<i64: 16, 58>}, {pipeline_mode = #tpu.pipeline_mode<synchronous>, transform_indices = @transform_1, window_bounds = array<i64: 58, 32>}, {pipeline_mode = #tpu.pipeline_mode<synchronous>, transform_indices = @transform_2, window_bounds = array<i64: 1, 32>}, {transform_indices = @transform_3, window_bounds = array<i64: 16, 32>}, {transform_indices = @transform_4, window_bounds = array<i64: 16, 32>}]} {
    %c0 = arith.constant 0 : index
    %c0_0 = arith.constant 0 : index
    %0 = vector.load %arg1[%c0, %c0_0] : memref<16x58xbf16, #tpu.memory_space<vmem>>, vector<16x58xbf16>
    %c0_1 = arith.constant 0 : index
    %c0_2 = arith.constant 0 : index
    %1 = vector.load %arg2[%c0_1, %c0_2] : memref<58x32xbf16, #tpu.memory_space<vmem>>, vector<58x32xbf16>
    %cst = arith.constant dense<0.000000e+00> : vector<16x32xf32>
    %2 = tpu.matmul %0, %1, %cst {dimension_numbers = #tpu.dot_dimension_numbers<[1], [0], [0], [1], [0, 0, 1, 1], [], []>} : vector<16x58xbf16>, vector<58x32xbf16>, vector<16x32xf32> -> vector<16x32xf32>
    %c0_3 = arith.constant 0 : index
    %c0_4 = arith.constant 0 : index
    %3 = vector.load %arg3[%c0_3, %c0_4] : memref<1x32xf32, #tpu.memory_space<vmem>>, vector<1x32xf32>
    %4 = vector.broadcast %3 : vector<1x32xf32> to vector<16x32xf32>
    %5 = arith.addf %2, %4 : vector<16x32xf32>
    %c0_5 = arith.constant 0 : index
    %c0_6 = arith.constant 0 : index
    %6 = vector.load %arg4[%c0_5, %c0_6] : memref<16x32xbf16, #tpu.memory_space<vmem>>, vector<16x32xbf16>
    %7 = arith.extf %6 : vector<16x32xbf16> to vector<16x32xf32>
    %8 = arith.addf %5, %7 : vector<16x32xf32>
    %9 = arith.truncf %8 : vector<16x32xf32> to vector<16x32xbf16>
    %c0_7 = arith.constant 0 : index
    %c0_8 = arith.constant 0 : index
    %10 = vector.load %arg5[%c0_7, %c0_8] : memref<16x32xbf16, #tpu.memory_space<vmem>>, vector<16x32xbf16>
    tpu.vector_store %arg5[%c0_7, %c0_8], %9 {strides = array<i32>} : memref<16x32xbf16, #tpu.memory_space<vmem>>, vector<16x32xbf16>,
    return
  }
  func.func @transform_0(%arg0: i32) -> (i32, i32) {
    %c0_i32 = arith.constant 0 : i32
    %c0_i32_0 = arith.constant 0 : i32
    return %arg0, %c0_i32 : i32, i32
  }
  func.func @transform_1(%arg0: i32) -> (i32, i32) {
    %c0_i32 = arith.constant 0 : i32
    %c0_i32_0 = arith.constant 0 : i32
    %c0_i32_1 = arith.constant 0 : i32
    return %c0_i32, %c0_i32_0 : i32, i32
  }
  func.func @transform_2(%arg0: i32) -> (i32, i32) {
    %c0_i32 = arith.constant 0 : i32
    %c0_i32_0 = arith.constant 0 : i32
    %c0_i32_1 = arith.constant 0 : i32
    return %c0_i32, %c0_i32_0 : i32, i32
  }
  func.func @transform_3(%arg0: i32) -> (i32, i32) {
    %c0_i32 = arith.constant 0 : i32
    %c0_i32_0 = arith.constant 0 : i32
    return %arg0, %c0_i32 : i32, i32
  }
  func.func @transform_4(%arg0: i32) -> (i32, i32) {
    %c0_i32 = arith.constant 0 : i32
    %c0_i32_0 = arith.constant 0 : i32
    return %arg0, %c0_i32 : i32, i32
  }
}

</mosaic_0001>

<llo_original>
// kernel: tpu_custom_call.1
$region0: #{tpu_custom_call.1}
  #allocation0 [shape = 'u32[]', space=smem, size = 0x4, offset = 0x4, fixed_abs, tag = 'smem constant byte address 0x4 - core index']
  #allocation1 [shape = 'u32[144,128]{1,0:T(1,128)}', space=vmem, size = 0x12000, scoped, tag = 'internal scratch']
  %s0 = inlined_call_operand.vmem [shape: bf16[16,58], index: 0, kind: input, shape index: {}]
  %s1 = inlined_call_operand.vmem [shape: bf16[58,32], index: 1, kind: input, shape index: {}]
  %s2 = inlined_call_operand.vmem [shape: f32[1,32], index: 2, kind: input, shape index: {}]
  %s3 = inlined_call_operand.vmem [shape: bf16[16,32], index: 3, kind: input, shape index: {}]
  %s4 = inlined_call_operand.hbm [shape: bf16[16,32], index: 4, kind: output, shape index: {}]
  %s5 = sld [smem:[#allocation0]]
  $region26: #{tpu_custom_call.1} parent=0
    _
  %s7 = ssub.s32 1, %s5
  %s8 = scalar_select 0, %s7, %s5
  $region1: #{tpu_custom_call.1} parent=0
    #allocation2 [shape = 'u8[4096]{0}', space=vmem, size = 0x1000, scoped, tag = 'output window, operand 0, single buffered']
    #allocation3 [shape = 's32[1]{0}', space=sflag, size = 0x4, scoped, tag = 'scoped memory for tpu_custom_call.1']
    %9 = vsyncpa [#allocation3], 0
    // Predicated region
    $region2: #{tpu_custom_call.1} parent=1 // pred_check
      _
    $region3: #{tpu_custom_call.1} parent=1 // pred_check_branch
      %11 = sbr.rel (0) target = $region5
    $region4: #{tpu_custom_call.1} parent=1 // pred_region
      _
    $region5: #{tpu_custom_call.1} parent=1 // pred_fallthru
      _
    // Predicated region
    $region6: #{tpu_custom_call.1} parent=1 // pred_check
      _
    $region7: #{tpu_custom_call.1} parent=1 // pred_check_branch
      %13 = sbr.rel (0) target = $region9
    $region8: #{tpu_custom_call.1} parent=1 // pred_region
      _
    $region9: #{tpu_custom_call.1} parent=1 // pred_fallthru
      _
    // Predicated region
    $region10: #{tpu_custom_call.1} parent=1 // pred_check
      _
    $region11: #{tpu_custom_call.1} parent=1 // pred_check_branch
      %15 = sbr.rel (0) target = $region13
    $region12: #{tpu_custom_call.1} parent=1 // pred_region
      _
    $region13: #{tpu_custom_call.1} parent=1 // pred_fallthru
      _
    // Predicated region
    $region14: #{tpu_custom_call.1} parent=1 // pred_check
      _
    $region15: #{tpu_custom_call.1} parent=1 // pred_check_branch
      %17 = sbr.rel (0) target = $region17
    $region16: #{tpu_custom_call.1} parent=1 // pred_region
      _
    $region17: #{tpu_custom_call.1} parent=1 // pred_fallthru
      _
    %v19 = vld [vmem:[%s0] sm:$0xf]
    %v20 = vld [vmem:[%s0 + $0x4] sm:$0xf]
    %v21 = vld [vmem:[%s1] sm:$0xf]
    %v22 = vld [vmem:[%s1 + $0x4] sm:$0xf]
    %v23 = vld [vmem:[%s1 + $0x8] sm:$0xf]
    %v24 = vld [vmem:[%s1 + $0xc] sm:$0xf]
    %v25 = vld [vmem:[%s1 + $0x10] sm:$0xf]
    %v26 = vld [vmem:[%s1 + $0x14] sm:$0xf]
    %v27 = vld [vmem:[%s1 + $0x18] sm:$0xf]
    %v28 = vld [vmem:[%s1 + $0x1c] sm:$0x1]
    %v29 = vld [vmem:[%s2] sm:$0x1]
    %v31 = vlaneseq
    %v32 = vshrl.u32 %v31, 7
    %v33 = vsub.s32 0, %v32
    %v34 = vrot.slane %v29, %v33
    %v38 = vunpack.c.l.b16 %v19
    %v39 = vunpack.c.l.b16 %v20
    %v40 = vpack.c.b16 %v39, %v38
    %v49 = vunpack.c.l.b16 %v21
    %v50 = vunpack.c.l.b16 %v22
    %v51 = vunpack.c.l.b16 %v23
    %v52 = vunpack.c.l.b16 %v24
    %v53 = vunpack.c.l.b16 %v25
    %v54 = vunpack.c.l.b16 %v26
    %v55 = vunpack.c.l.b16 %v27
    %v56 = vunpack.c.l.b16 %v28
    %v57 = vpack.c.b16 %v50, %v49
    %v58 = vpack.c.b16 %v52, %v51
    %v59 = vpack.c.b16 %v54, %v53
    %v60 = vpack.c.b16 %v56, %v55
    %vm64 = vcmask 474112
    %v66 = vsel %vm64, %v40, 0
    %vm68 = vcmask 1044480
    %v70 = vsel %vm68, %v60, 0
    %72 = vmatprep.subr.bf16.mxu0 0
    %73 = vmatpush1.bf16.msra.mxu0 0
    %74 = vmatprep.subr.bf16.mxu0 0
    %75 = vmatpush1.bf16.msra.mxu0 0
    %76 = vmatprep.subr.bf16.mxu0 0
    %77 = vmatpush1.bf16.msra.mxu0 0
    %78 = vmatprep.subr.bf16.mxu0 0
    %79 = vmatpush1.bf16.msra.mxu0 0
    %80 = vmatprep.subr.bf16.mxu0 0
    %81 = vmatpush1.bf16.msra.mxu0 %v70
    %82 = vmatprep.subr.bf16.mxu0 0
    %83 = vmatpush1.bf16.msra.mxu0 %v59
    %84 = vmatprep.subr.bf16.mxu0 0
    %85 = vmatpush1.bf16.msra.mxu0 %v58
    %86 = vmatprep.subr.bf16.mxu0 0
    %87 = vmatpush1.bf16.msra.mxu0 %v57
    %88 = vmatprep.subr.bf16.mxu0 0
    %89 = vmatpush2.bf16.msra.mxu0 0
    %90 = vmatprep.subr.bf16.mxu0 0
    %91 = vmatpush2.bf16.msra.mxu0 0
    %92 = vmatprep.subr.bf16.mxu0 0
    %93 = vmatpush2.bf16.msra.mxu0 0
    %94 = vmatprep.subr.bf16.mxu0 0
    %95 = vmatpush2.bf16.msra.mxu0 0
    %96 = vmatprep.subr.bf16.mxu0 0
    %97 = vmatpush2.bf16.msra.mxu0 0
    %98 = vmatprep.subr.bf16.mxu0 0
    %99 = vmatpush2.bf16.msra.mxu0 0
    %100 = vmatprep.subr.bf16.mxu0 0
    %101 = vmatpush2.bf16.msra.mxu0 0
    %102 = vmatprep.subr.bf16.mxu0 0
    %103 = vmatpush2.bf16.msra.mxu0 0
    %104 = vmatprep.mubr.bf16.mxu0 0
    %105 = vmatmul.mubr.bf16.gmra.mxu0 %v66
    %v106 = vpop.f32.mrf.mxu0
    %v107 = vadd.f32 %v34, %v106
    %v108 = vpop.f32.mrf.mxu0
    %v109 = vpop.f32.mrf.mxu0
    %v110 = vadd.f32 %v34, %v109
    %v111 = vpop.f32.mrf.mxu0
    %112 = vdwg.mxu0
    %v113 = vld [vmem:[%s3] sm:$0xf]
    %v114 = vld [vmem:[%s3 + $0x4] sm:$0xf]
    %v115 = vunpack.c.l.bf16 %v113
    %v116 = vunpack.c.l.bf16 %v114
    %v117 = vadd.f32 %v107, %v115
    %v118 = vadd.f32 %v110, %v116
    %v119 = vpack.c.bf16 %v118, %v117
    %v121 = vunpack.c.l.b16 %v119
    %v122 = vunpack.c.h.b16 %v119
    %v123 = vpack.c.b16 %v121, %v121
    %v124 = vpack.c.b16 %v122, %v122
    %vm127 = vcmask 257024
    %128 = vst.msk [vmem:[#allocation2] sm:$0xf] %vm127, %v123
    %129 = vst.msk [vmem:[#allocation2 + $0x4] sm:$0xf] %vm127, %v124
    // Predicated region
    $region18: #{tpu_custom_call.1} parent=1 // pred_check
      _
    $region19: #{tpu_custom_call.1} parent=1 // pred_check_branch
      %131 = sbr.rel (0) target = $region21
    $region20: #{tpu_custom_call.1} parent=1 // pred_region
      %s133 = ssub.s32 128, 128
      %134 = vsyncadd [#allocation3], %s133
      %s135 = sshll.u32 [#allocation2], 4
      %s136 = int_to_ptr.vmem [resolvable:$true] %s135
      %141 = dma.vmem_to_hbm [thread:$0]  %s136, 128, %s4, [#allocation3], 64, 64, 4
    $region21: #{tpu_custom_call.1} parent=1 // pred_fallthru
      _
    // Predicated region
    $region22: #{tpu_custom_call.1} parent=1 // pred_check
      _
    $region23: #{tpu_custom_call.1} parent=1 // pred_check_branch
      %143 = sbr.rel (0) target = $region25
    $region24: #{tpu_custom_call.1} parent=1 // pred_region
      %144 = dma.done [#allocation3], 128
    $region25: #{tpu_custom_call.1} parent=1 // pred_fallthru
      _
    %145 = vsyncpa [#allocation3], 1

</llo_original>
